<compile_context>
chip_gen: v6e
topology: v6e:2x2x1
jax: 0.10.0
libtpu: 0.0.40
codegen_flags: <defaults>
</compile_context>

<pallas_src>
import functools
import math

import jax
import jax.numpy as jnp
from jax.experimental import pallas as pl
from jax.experimental.pallas import tpu as pltpu


def _silu(x):
    # silu(x) = x * sigmoid(x);  sigmoid(x) == 0.5 * (tanh(0.5 x) + 1)
    # tanh lands on the EUP slot; avoids the VALU divide in jax.nn.sigmoid.
    return x * (0.5 * jnp.tanh(0.5 * x) + 0.5)


def _round_up(v, m):
    return ((v + m - 1) // m) * m


def sgp_kernel(x_ref, pos_ref, wconv_ref, w1_ref, w2_ref, wr_ref, bias_ref,
               out_ref, *, C, H, OH):
    """Fused: grouped-conv encoder + SiLU + node-emb add + 2-layer MLP + readout."""
    f32 = jnp.float32
    cdt = wconv_ref.dtype                      # MXU operand dtype (bf16)

    bias = bias_ref[...]                       # [4, PAD] float32
    b_conv = bias[0:1, :C]
    b_1 = bias[1:2, :H]
    b_2 = bias[2:3, :H]
    b_r = bias[3:4, :OH]

    # input encoder: block-diagonal (grouped 1x1 conv) matmul + bias + SiLU.
    # x streams in as f32; cast to bf16 here (VPU slack) rather than in XLA.
    h = jnp.dot(x_ref[...].astype(cdt), wconv_ref[...],
                preferred_element_type=f32) + b_conv
    h = _silu(h)

    # positional encoding: pre-tiled [tile_m, C] f32, DMA'd once (constant map)
    h = h + pos_ref[...]

    # 2-layer MLP (SiLU); bf16 MXU operands, f32 accumulation / activations
    # (f32 activations are kept for v5e, which has no bf16 VPU/EUP).
    h = _silu(jnp.dot(h.astype(cdt), w1_ref[...], preferred_element_type=f32) + b_1)
    h = _silu(jnp.dot(h.astype(cdt), w2_ref[...], preferred_element_type=f32) + b_2)

    # readout: unpadded [tile_m, OH] bf16 store (full-last-dim block).
    y = jnp.dot(h.astype(cdt), wr_ref[...], preferred_element_type=f32) + b_r
    out_ref[...] = y.astype(out_ref.dtype)


def _pick_tile(batch, n_nodes, max_rows=2048):
    """Pick reps = whole node-blocks per row tile.

    Guarantees:
      * tile_m = reps * n_nodes is a multiple of 8 (sublane rule): reps is a
        multiple of `needed = 8 // gcd(n_nodes, 8)`.
      * tile_m stays ~<= max_rows whenever possible (bounded VMEM, pipelining).
      * >= 2 grid steps whenever the batch allows (v7x: 2 TensorCores shard a
        'parallel' grid axis only if there is more than one step).
    Returns (reps, tile_m, grid, pad_batch); pad_batch extra batch entries of
    zero padding are appended so that grid * reps covers the batch.
    """
    needed = 8 // math.gcd(n_nodes, 8)
    budget = max(1, max_rows // n_nodes)
    reps = max(needed, (budget // needed) * needed)
    if reps >= batch:                               # never exceed the batch
        if batch >= needed:
            reps = max(needed, (batch // needed) * needed)
        else:
            reps = needed
    if batch > needed and math.ceil(batch / reps) < 2:
        # shrink so v7x gets at least two parallel grid steps
        reps = max(needed, ((batch // 2) // needed) * needed)
    grid = math.ceil(batch / reps)
    pad_batch = grid * reps - batch
    return reps, reps * n_nodes, grid, pad_batch


def sgp_forward(x, params, *, horizon, output_size,
                compute_dtype=jnp.bfloat16, max_tile_rows=2048):
    """x: [b, t, n, f] or [b, n, f] -> [b, horizon, n, output_size] (float32)."""
    if x.ndim == 4:
        x = x[:, -1]                           # last time step, as in forward()
    b, n, f_in = x.shape

    wconv, bconv = params["wconv"], params["bconv"]       # [f_in, C], [C]
    w1, b1 = params["w1"], params["b1"]                   # [C, H], [H]
    w2, b2 = params["w2"], params["b2"]                   # [H, H], [H]
    wr, br = params["wr"], params["br"]                   # [H, OH], [OH]
    node_emb = params["node_emb"]                         # [n, emb]
    w_emb, b_emb = params["w_emb"], params["b_emb"]       # [emb, C], [C]

    C = wconv.shape[1]
    H = w1.shape[1]
    OH = wr.shape[1]                           # horizon * output_size (unpadded)
    PAD = _round_up(max(C, H, OH), 128)        # bias slab lane width (tiny)

    # tiling: whole node blocks per row tile, sublane-aligned, >=2 grid steps
    reps, tile_m, grid, pad_b = _pick_tile(b, n, max_rows=max_tile_rows)

    # glue: tiny positional-embedding linear, kept f32 and pre-tiled to one
    # row-tile's worth so the kernel body is pure matmul + SiLU.
    pos = (node_emb @ w_emb + b_emb).astype(jnp.float32)   # [n, C]
    pos_tiled = jnp.tile(pos, (reps, 1))                   # [tile_m, C]

    # pack the four bias vectors into one f32 slab: [4, PAD]
    def _row(v):
        v = v.reshape(-1).astype(jnp.float32)
        return jnp.pad(v, ((0, PAD - v.size),))
    bias = jnp.stack([_row(bconv), _row(b1), _row(b2), _row(br)], axis=0)

    # weights: single bf16 cast point (tiny, resident); x stays f32 and is
    # cast inside the kernel to avoid an extra HBM pass.
    wconv_c = wconv.astype(compute_dtype)
    w1_c = w1.astype(compute_dtype)
    w2_c = w2.astype(compute_dtype)
    wr_c = wr.astype(compute_dtype)

    M = b * n
    x2 = x.reshape(M, f_in)
    if pad_b:
        x2 = jnp.pad(x2, ((0, pad_b * n), (0, 0)))
    M_pad = x2.shape[0]
    assert M_pad == grid * tile_m

    rows = lambda i: (i, 0)
    full = lambda i: (0, 0)

    kernel = functools.partial(sgp_kernel, C=C, H=H, OH=OH)

    out = pl.pallas_call(
        kernel,
        out_shape=jax.ShapeDtypeStruct((M_pad, OH), jnp.bfloat16),
        grid_spec=pltpu.PrefetchScalarGridSpec(
            num_scalar_prefetch=0,
            grid=(grid,),
            in_specs=[
                pl.BlockSpec((tile_m, f_in), rows),   # x tile (f32, streamed)
                pl.BlockSpec((tile_m, C), full),      # pre-tiled pos (f32)
                pl.BlockSpec((f_in, C), full),        # conv weight (block-diag dense)
                pl.BlockSpec((C, H), full),           # mlp W1
                pl.BlockSpec((H, H), full),           # mlp W2
                pl.BlockSpec((H, OH), full),          # readout W (unpadded)
                pl.BlockSpec((4, PAD), full),         # packed biases (f32)
            ],
            out_specs=pl.BlockSpec((tile_m, OH), rows),
        ),
        compiler_params=pltpu.CompilerParams(
            dimension_semantics=("parallel",),
            vmem_limit_bytes=32 * 1024 * 1024),
    )(x2, pos_tiled, wconv_c, w1_c, w2_c, wr_c, bias)

    # glue: drop batch padding, cast, then [M, OH] -> [b, horizon, n, out]
    out = out[:M].astype(jnp.float32).reshape(b, n, horizon, output_size)
    return jnp.transpose(out, (0, 2, 1, 3))


def make_params(key, *, input_size, order, n_nodes, hidden_size, mlp_size,
                output_size, horizon, emb_size):
    out_channels = hidden_size - hidden_size % order
    assert input_size % order == 0
    in_per_g = input_size // order
    out_per_g = out_channels // order

    keys = jax.random.split(key, 10)
    scale = 0.1

    # grouped Conv1d(kernel_size=1) weights: [out_channels, in_per_g]
    conv_w = jax.random.normal(keys[0], (out_channels, in_per_g), jnp.float32) * scale
    # equivalent block-diagonal dense weight [input_size, out_channels]
    # TODO(synk): for large `order`/sizes, replace the zero-padded block-diagonal
    # with `order` small dense contractions to avoid wasted weight bandwidth.
    wconv = jnp.zeros((input_size, out_channels), jnp.float32)
    for g in range(order):
        blk = conv_w[g * out_per_g:(g + 1) * out_per_g, :].T      # [in_per_g, out_per_g]
        wconv = wconv.at[g * in_per_g:(g + 1) * in_per_g,
                         g * out_per_g:(g + 1) * out_per_g].set(blk)

    params = dict(
        wconv=wconv,
        bconv=jax.random.normal(keys[1], (out_channels,), jnp.float32) * scale,
        node_emb=jax.random.normal(keys[2], (n_nodes, emb_size), jnp.float32) * scale,
        w_emb=jax.random.normal(keys[3], (emb_size, out_channels), jnp.float32) * scale,
        b_emb=jax.random.normal(keys[4], (out_channels,), jnp.float32) * scale,
        w1=jax.random.normal(keys[5], (out_channels, mlp_size), jnp.float32) * scale,
        b1=jax.random.normal(keys[6], (mlp_size,), jnp.float32) * scale,
        w2=jax.random.normal(keys[7], (mlp_size, mlp_size), jnp.float32) * scale,
        b2=jax.random.normal(keys[8], (mlp_size,), jnp.float32) * scale,
        wr=jax.random.normal(keys[9], (mlp_size, output_size * horizon),
                             jnp.float32) * scale,
        br=jnp.zeros((output_size * horizon,), jnp.float32),
    )
    return params


def reference_forward(x, params, *, horizon, output_size):
    """Pure-JAX float32 reference of the same forward pass."""
    if x.ndim == 4:
        x = x[:, -1]
    h = x @ params["wconv"] + params["bconv"]
    h = h * jax.nn.sigmoid(h)
    pos = params["node_emb"] @ params["w_emb"] + params["b_emb"]
    h = h + pos[None]
    h = h @ params["w1"] + params["b1"]
    h = h * jax.nn.sigmoid(h)
    h = h @ params["w2"] + params["b2"]
    h = h * jax.nn.sigmoid(h)
    y = h @ params["wr"] + params["br"]
    b, n, _ = y.shape
    y = y.reshape(b, n, horizon, output_size)
    return jnp.transpose(y, (0, 2, 1, 3))


if __name__ == "__main__":
    # small, consistent hyper-parameters
    batch = 2
    time = 4
    input_size = 8
    order = 2
    n_nodes = 16
    hidden_size = 32          # out_channels = 32
    mlp_size = 32
    output_size = 4
    horizon = 3
    emb_size = 32

    key = jax.random.PRNGKey(0)
    kx, kp = jax.random.split(key)

    # x: [b, t, n, f]  (forward() takes the last time step)
    x = jax.random.normal(kx, (batch, time, n_nodes, input_size), jnp.float32)
    params = make_params(kp, input_size=input_size, order=order, n_nodes=n_nodes,
                         hidden_size=hidden_size, mlp_size=mlp_size,
                         output_size=output_size, horizon=horizon, emb_size=emb_size)

    out = sgp_forward(x, params, horizon=horizon, output_size=output_size)
    out = jax.block_until_ready(out)

    ref = reference_forward(x, params, horizon=horizon, output_size=output_size)
    assert out.shape == (batch, horizon, n_nodes, output_size), out.shape
    # bf16 MXU operands + bf16 output store vs pure-f32 reference
    assert jnp.allclose(out, ref, atol=2e-2, rtol=2e-2), "mismatch vs JAX reference"

    print("KERNEL_OK")
</pallas_src>

<mosaic_0001>
module attributes {stable_mosaic.version = 11 : i64} {
  func.func @sgp_kernel(%arg0: i32, %arg1: memref<16x8xf32, #tpu.memory_space<vmem>>, %arg2: memref<16x32xf32, #tpu.memory_space<vmem>>, %arg3: memref<8x32xbf16, #tpu.memory_space<vmem>>, %arg4: memref<32x32xbf16, #tpu.memory_space<vmem>>, %arg5: memref<32x32xbf16, #tpu.memory_space<vmem>>, %arg6: memref<32x12xbf16, #tpu.memory_space<vmem>>, %arg7: memref<4x128xf32, #tpu.memory_space<vmem>>, %arg8: memref<16x12xbf16, #tpu.memory_space<vmem>>) attributes {dimension_semantics = [#tpu.dimension_semantics<parallel>], iteration_bounds = array<i64: 2>, scalar_prefetch = 0 : i64, scratch_operands = 0 : i64, tpu.core_type = #tpu.core_type<tc>, window_params = [{transform_indices = @transform_0, window_bounds = array<i64: 16, 8>}, {pipeline_mode = #tpu.pipeline_mode<synchronous>, transform_indices = @transform_1, window_bounds = array<i64: 16, 32>}, {pipeline_mode = #tpu.pipeline_mode<synchronous>, transform_indices = @transform_2, window_bounds = array<i64: 8, 32>}, {pipeline_mode = #tpu.pipeline_mode<synchronous>, transform_indices = @transform_3, window_bounds = array<i64: 32, 32>}, {pipeline_mode = #tpu.pipeline_mode<synchronous>, transform_indices = @transform_4, window_bounds = array<i64: 32, 32>}, {pipeline_mode = #tpu.pipeline_mode<synchronous>, transform_indices = @transform_5, window_bounds = array<i64: 32, 12>}, {pipeline_mode = #tpu.pipeline_mode<synchronous>, transform_indices = @transform_6, window_bounds = array<i64: 4, 128>}, {transform_indices = @transform_7, window_bounds = array<i64: 16, 12>}]} {
    %c0 = arith.constant 0 : index
    %c0_0 = arith.constant 0 : index
    %0 = vector.load %arg7[%c0, %c0_0] : memref<4x128xf32, #tpu.memory_space<vmem>>, vector<4x128xf32>
    %1 = vector.extract_strided_slice %0 {offsets = [0, 0], sizes = [1, 32], strides = [1, 1]} : vector<4x128xf32> to vector<1x32xf32>
    %2 = vector.extract_strided_slice %0 {offsets = [1, 0], sizes = [1, 32], strides = [1, 1]} : vector<4x128xf32> to vector<1x32xf32>
    %3 = vector.extract_strided_slice %0 {offsets = [2, 0], sizes = [1, 32], strides = [1, 1]} : vector<4x128xf32> to vector<1x32xf32>
    %4 = vector.extract_strided_slice %0 {offsets = [3, 0], sizes = [1, 12], strides = [1, 1]} : vector<4x128xf32> to vector<1x12xf32>
    %c0_1 = arith.constant 0 : index
    %c0_2 = arith.constant 0 : index
    %5 = vector.load %arg1[%c0_1, %c0_2] : memref<16x8xf32, #tpu.memory_space<vmem>>, vector<16x8xf32>
    %6 = arith.truncf %5 : vector<16x8xf32> to vector<16x8xbf16>
    %c0_3 = arith.constant 0 : index
    %c0_4 = arith.constant 0 : index
    %7 = vector.load %arg3[%c0_3, %c0_4] : memref<8x32xbf16, #tpu.memory_space<vmem>>, vector<8x32xbf16>
    %cst = arith.constant dense<0.000000e+00> : vector<16x32xf32>
    %8 = tpu.matmul %6, %7, %cst {dimension_numbers = #tpu.dot_dimension_numbers<[1], [0], [0], [1], [0, 0, 1, 1], [], []>} : vector<16x8xbf16>, vector<8x32xbf16>, vector<16x32xf32> -> vector<16x32xf32>
    %9 = vector.broadcast %1 : vector<1x32xf32> to vector<16x32xf32>
    %10 = arith.addf %8, %9 : vector<16x32xf32>
    %cst_5 = arith.constant 5.000000e-01 : f32
    %11 = vector.broadcast %cst_5 : f32 to vector<16x32xf32>
    %12 = arith.mulf %11, %10 : vector<16x32xf32>
    %13 = math.tanh %12 : vector<16x32xf32>
    %cst_6 = arith.constant 5.000000e-01 : f32
    %14 = vector.broadcast %cst_6 : f32 to vector<16x32xf32>
    %15 = arith.mulf %14, %13 : vector<16x32xf32>
    %cst_7 = arith.constant 5.000000e-01 : f32
    %16 = vector.broadcast %cst_7 : f32 to vector<16x32xf32>
    %17 = arith.addf %15, %16 : vector<16x32xf32>
    %18 = arith.mulf %10, %17 : vector<16x32xf32>
    %c0_8 = arith.constant 0 : index
    %c0_9 = arith.constant 0 : index
    %19 = vector.load %arg2[%c0_8, %c0_9] : memref<16x32xf32, #tpu.memory_space<vmem>>, vector<16x32xf32>
    %20 = arith.addf %18, %19 : vector<16x32xf32>
    %21 = arith.truncf %20 : vector<16x32xf32> to vector<16x32xbf16>
    %c0_10 = arith.constant 0 : index
    %c0_11 = arith.constant 0 : index
    %22 = vector.load %arg4[%c0_10, %c0_11] : memref<32x32xbf16, #tpu.memory_space<vmem>>, vector<32x32xbf16>
    %cst_12 = arith.constant dense<0.000000e+00> : vector<16x32xf32>
    %23 = tpu.matmul %21, %22, %cst_12 {dimension_numbers = #tpu.dot_dimension_numbers<[1], [0], [0], [1], [0, 0, 1, 1], [], []>} : vector<16x32xbf16>, vector<32x32xbf16>, vector<16x32xf32> -> vector<16x32xf32>
    %24 = vector.broadcast %2 : vector<1x32xf32> to vector<16x32xf32>
    %25 = arith.addf %23, %24 : vector<16x32xf32>
    %cst_13 = arith.constant 5.000000e-01 : f32
    %26 = vector.broadcast %cst_13 : f32 to vector<16x32xf32>
    %27 = arith.mulf %26, %25 : vector<16x32xf32>
    %28 = math.tanh %27 : vector<16x32xf32>
    %cst_14 = arith.constant 5.000000e-01 : f32
    %29 = vector.broadcast %cst_14 : f32 to vector<16x32xf32>
    %30 = arith.mulf %29, %28 : vector<16x32xf32>
    %cst_15 = arith.constant 5.000000e-01 : f32
    %31 = vector.broadcast %cst_15 : f32 to vector<16x32xf32>
    %32 = arith.addf %30, %31 : vector<16x32xf32>
    %33 = arith.mulf %25, %32 : vector<16x32xf32>
    %34 = arith.truncf %33 : vector<16x32xf32> to vector<16x32xbf16>
    %c0_16 = arith.constant 0 : index
    %c0_17 = arith.constant 0 : index
    %35 = vector.load %arg5[%c0_16, %c0_17] : memref<32x32xbf16, #tpu.memory_space<vmem>>, vector<32x32xbf16>
    %cst_18 = arith.constant dense<0.000000e+00> : vector<16x32xf32>
    %36 = tpu.matmul %34, %35, %cst_18 {dimension_numbers = #tpu.dot_dimension_numbers<[1], [0], [0], [1], [0, 0, 1, 1], [], []>} : vector<16x32xbf16>, vector<32x32xbf16>, vector<16x32xf32> -> vector<16x32xf32>
    %37 = vector.broadcast %3 : vector<1x32xf32> to vector<16x32xf32>
    %38 = arith.addf %36, %37 : vector<16x32xf32>
    %cst_19 = arith.constant 5.000000e-01 : f32
    %39 = vector.broadcast %cst_19 : f32 to vector<16x32xf32>
    %40 = arith.mulf %39, %38 : vector<16x32xf32>
    %41 = math.tanh %40 : vector<16x32xf32>
    %cst_20 = arith.constant 5.000000e-01 : f32
    %42 = vector.broadcast %cst_20 : f32 to vector<16x32xf32>
    %43 = arith.mulf %42, %41 : vector<16x32xf32>
    %cst_21 = arith.constant 5.000000e-01 : f32
    %44 = vector.broadcast %cst_21 : f32 to vector<16x32xf32>
    %45 = arith.addf %43, %44 : vector<16x32xf32>
    %46 = arith.mulf %38, %45 : vector<16x32xf32>
    %47 = arith.truncf %46 : vector<16x32xf32> to vector<16x32xbf16>
    %c0_22 = arith.constant 0 : index
    %c0_23 = arith.constant 0 : index
    %48 = vector.load %arg6[%c0_22, %c0_23] : memref<32x12xbf16, #tpu.memory_space<vmem>>, vector<32x12xbf16>
    %cst_24 = arith.constant dense<0.000000e+00> : vector<16x12xf32>
    %49 = tpu.matmul %47, %48, %cst_24 {dimension_numbers = #tpu.dot_dimension_numbers<[1], [0], [0], [1], [0, 0, 1, 1], [], []>} : vector<16x32xbf16>, vector<32x12xbf16>, vector<16x12xf32> -> vector<16x12xf32>
    %50 = vector.broadcast %4 : vector<1x12xf32> to vector<16x12xf32>
    %51 = arith.addf %49, %50 : vector<16x12xf32>
    %52 = arith.truncf %51 : vector<16x12xf32> to vector<16x12xbf16>
    %c0_25 = arith.constant 0 : index
    %c0_26 = arith.constant 0 : index
    %53 = vector.load %arg8[%c0_25, %c0_26] : memref<16x12xbf16, #tpu.memory_space<vmem>>, vector<16x12xbf16>
    tpu.vector_store %arg8[%c0_25, %c0_26], %52 {strides = array<i32>} : memref<16x12xbf16, #tpu.memory_space<vmem>>, vector<16x12xbf16>,
    return
  }
  func.func @transform_0(%arg0: i32) -> (i32, i32) {
    %c0_i32 = arith.constant 0 : i32
    %c0_i32_0 = arith.constant 0 : i32
    return %arg0, %c0_i32 : i32, i32
  }
  func.func @transform_1(%arg0: i32) -> (i32, i32) {
    %c0_i32 = arith.constant 0 : i32
    %c0_i32_0 = arith.constant 0 : i32
    %c0_i32_1 = arith.constant 0 : i32
    return %c0_i32, %c0_i32_0 : i32, i32
  }
  func.func @transform_2(%arg0: i32) -> (i32, i32) {
    %c0_i32 = arith.constant 0 : i32
    %c0_i32_0 = arith.constant 0 : i32
    %c0_i32_1 = arith.constant 0 : i32
    return %c0_i32, %c0_i32_0 : i32, i32
  }
  func.func @transform_3(%arg0: i32) -> (i32, i32) {
    %c0_i32 = arith.constant 0 : i32
    %c0_i32_0 = arith.constant 0 : i32
    %c0_i32_1 = arith.constant 0 : i32
    return %c0_i32, %c0_i32_0 : i32, i32
  }
  func.func @transform_4(%arg0: i32) -> (i32, i32) {
    %c0_i32 = arith.constant 0 : i32
    %c0_i32_0 = arith.constant 0 : i32
    %c0_i32_1 = arith.constant 0 : i32
    return %c0_i32, %c0_i32_0 : i32, i32
  }
  func.func @transform_5(%arg0: i32) -> (i32, i32) {
    %c0_i32 = arith.constant 0 : i32
    %c0_i32_0 = arith.constant 0 : i32
    %c0_i32_1 = arith.constant 0 : i32
    return %c0_i32, %c0_i32_0 : i32, i32
  }
  func.func @transform_6(%arg0: i32) -> (i32, i32) {
    %c0_i32 = arith.constant 0 : i32
    %c0_i32_0 = arith.constant 0 : i32
    %c0_i32_1 = arith.constant 0 : i32
    return %c0_i32, %c0_i32_0 : i32, i32
  }
  func.func @transform_7(%arg0: i32) -> (i32, i32) {
    %c0_i32 = arith.constant 0 : i32
    %c0_i32_0 = arith.constant 0 : i32
    return %arg0, %c0_i32 : i32, i32
  }
}

</mosaic_0001>

<llo_original>
// kernel: tpu_custom_call.1
$region0: #{tpu_custom_call.1}
  #allocation0 [shape = 'u32[]', space=smem, size = 0x4, offset = 0x4, fixed_abs, tag = 'smem constant byte address 0x4 - core index']
  #allocation1 [shape = 'u32[144,128]{1,0:T(1,128)}', space=vmem, size = 0x12000, scoped, tag = 'internal scratch']
  %s0 = inlined_call_operand.vmem [shape: f32[32,8], index: 0, kind: input, shape index: {}]
  %s1 = inlined_call_operand.vmem [shape: f32[16,32], index: 1, kind: input, shape index: {}]
  %s2 = inlined_call_operand.vmem [shape: bf16[8,32], index: 2, kind: input, shape index: {}]
  %s3 = inlined_call_operand.vmem [shape: bf16[32,32], index: 3, kind: input, shape index: {}]
  %s4 = inlined_call_operand.vmem [shape: bf16[32,32], index: 4, kind: input, shape index: {}]
  %s5 = inlined_call_operand.vmem [shape: bf16[32,12], index: 5, kind: input, shape index: {}]
  %s6 = inlined_call_operand.vmem [shape: f32[4,128], index: 6, kind: input, shape index: {}]
  %s7 = inlined_call_operand.vmem [shape: bf16[32,12], index: 7, kind: output, shape index: {}]
  %s8 = sld [smem:[#allocation0]]
  $region61: #{tpu_custom_call.1} parent=0
    _
  %s10 = ssub.s32 1, %s8
  %s11 = scalar_select 0, %s10, %s8
  loop: start=0, step=1, limit=4
  $region2: #{tpu_custom_call.1} parent=0 // loop_pre_header
    _
  $region3: #{tpu_custom_call.1} parent=0 // loop_header
    %s13 = sphi 0, %s17
    %p14 = scmp.ge.s32.totalorder %s13, 4
    %s23 = sphi 0, %s25
    %s26 = sphi 0, %s23
    %s27 = sphi 0, %s26
    %s43 = sphi 0, %s27
    %s47 = sphi 0, %s47
    %s49 = sphi 0, %s47
    %s50 = sphi 0, %s49
    %s64 = sphi 0, %s50
    %s68 = sphi 0, %s68
    %s70 = sphi 0, %s68
    %s71 = sphi 0, %s70
    %s85 = sphi 0, %s71
    %s89 = sphi 0, %s89
    %s91 = sphi 0, %s89
    %s92 = sphi 0, %s91
    %s106 = sphi 0, %s92
    %s110 = sphi 0, %s110
    %s112 = sphi 0, %s110
    %s113 = sphi 0, %s112
    %s127 = sphi 0, %s113
    %s131 = sphi 0, %s131
    %s133 = sphi 0, %s131
    %s134 = sphi 0, %s133
    %s148 = sphi 0, %s134
    %s152 = sphi 0, %s152
    %s154 = sphi 0, %s152
    %s155 = sphi 0, %s154
    %s169 = sphi 0, %s155
    %s175 = sphi 0, %s177
    %s178 = sphi 0, %s175
    %s179 = sphi 0, %s178
    %s195 = sphi 0, %s179
  $region4: #{tpu_custom_call.1} parent=0 // loop_header_branch
    %16 = sbr.rel (%p14) target = $region8
  $region5: #{tpu_custom_call.1} parent=0 // loop_body
    %s18 = ssub.s32 %s13, 1
    %s19 = ssub.s32 %s13, 2
    %s20 = sadd.s32 %s13, 1
    %s21 = ssub.s32 %s13, %s20
    %p22 = scmp.eq.s32.totalorder %s21, 0
    %s24 = sadd.s32 %s23, 1
    %s25 = scalar_select %p22, %s23, %s24
    %p28 = pneg %p22
    %p29 = scmp.eq.s32.totalorder %s13, 1
    %p30 = por %p28, %p29
    %p31 = scmp.ne.s32.totalorder %s23, %s26
    %p32 = scmp.eq.s32.totalorder %s13, 0
    %p33 = por %p31, %p32
    %p34 = scmp.ne.s32.totalorder %s23, %s26
    %p35 = scmp.eq.s32.totalorder %s18, 1
    %p36 = por %p34, %p35
    %p37 = scmp.ne.s32.totalorder %s26, %s27
    %p38 = scmp.eq.s32.totalorder %s18, 0
    %p39 = por %p37, %p38
    %p40 = scmp.ne.s32.totalorder %s26, %s27
    %p41 = scmp.eq.s32.totalorder %s19, 1
    %p42 = por %p40, %p41
    %p44 = scmp.ne.s32.totalorder %s27, %s43
    %p45 = scmp.eq.s32.totalorder %s19, 0
    %p46 = por %p44, %p45
    %s48 = sadd.s32 %s47, 1
    %p51 = scmp.eq.s32.totalorder %s13, 1
    %p52 = scmp.ne.s32.totalorder %s47, %s49
    %p53 = scmp.eq.s32.totalorder %s13, 0
    %p54 = por %p52, %p53
    %p55 = scmp.ne.s32.totalorder %s47, %s49
    %p56 = scmp.eq.s32.totalorder %s18, 1
    %p57 = por %p55, %p56
    %p58 = scmp.ne.s32.totalorder %s49, %s50
    %p59 = scmp.eq.s32.totalorder %s18, 0
    %p60 = por %p58, %p59
    %p61 = scmp.ne.s32.totalorder %s49, %s50
    %p62 = scmp.eq.s32.totalorder %s19, 1
    %p63 = por %p61, %p62
    %p65 = scmp.ne.s32.totalorder %s50, %s64
    %p66 = scmp.eq.s32.totalorder %s19, 0
    %p67 = por %p65, %p66
    %s69 = sadd.s32 %s68, 1
    %p72 = scmp.eq.s32.totalorder %s13, 1
    %p73 = scmp.ne.s32.totalorder %s68, %s70
    %p74 = scmp.eq.s32.totalorder %s13, 0
    %p75 = por %p73, %p74
    %p76 = scmp.ne.s32.totalorder %s68, %s70
    %p77 = scmp.eq.s32.totalorder %s18, 1
    %p78 = por %p76, %p77
    %p79 = scmp.ne.s32.totalorder %s70, %s71
    %p80 = scmp.eq.s32.totalorder %s18, 0
    %p81 = por %p79, %p80
    %p82 = scmp.ne.s32.totalorder %s70, %s71
    %p83 = scmp.eq.s32.totalorder %s19, 1
    %p84 = por %p82, %p83
    %p86 = scmp.ne.s32.totalorder %s71, %s85
    %p87 = scmp.eq.s32.totalorder %s19, 0
    %p88 = por %p86, %p87
    %s90 = sadd.s32 %s89, 1
    %p93 = scmp.eq.s32.totalorder %s13, 1
    %p94 = scmp.ne.s32.totalorder %s89, %s91
    %p95 = scmp.eq.s32.totalorder %s13, 0
    %p96 = por %p94, %p95
    %p97 = scmp.ne.s32.totalorder %s89, %s91
    %p98 = scmp.eq.s32.totalorder %s18, 1
    %p99 = por %p97, %p98
    %p100 = scmp.ne.s32.totalorder %s91, %s92
    %p101 = scmp.eq.s32.totalorder %s18, 0
    %p102 = por %p100, %p101
    %p103 = scmp.ne.s32.totalorder %s91, %s92
    %p104 = scmp.eq.s32.totalorder %s19, 1
    %p105 = por %p103, %p104
    %p107 = scmp.ne.s32.totalorder %s92, %s106
    %p108 = scmp.eq.s32.totalorder %s19, 0
    %p109 = por %p107, %p108
    %s111 = sadd.s32 %s110, 1
    %p114 = scmp.eq.s32.totalorder %s13, 1
    %p115 = scmp.ne.s32.totalorder %s110, %s112
    %p116 = scmp.eq.s32.totalorder %s13, 0
    %p117 = por %p115, %p116
    %p118 = scmp.ne.s32.totalorder %s110, %s112
    %p119 = scmp.eq.s32.totalorder %s18, 1
    %p120 = por %p118, %p119
    %p121 = scmp.ne.s32.totalorder %s112, %s113
    %p122 = scmp.eq.s32.totalorder %s18, 0
    %p123 = por %p121, %p122
    %p124 = scmp.ne.s32.totalorder %s112, %s113
    %p125 = scmp.eq.s32.totalorder %s19, 1
    %p126 = por %p124, %p125
    %p128 = scmp.ne.s32.totalorder %s113, %s127
    %p129 = scmp.eq.s32.totalorder %s19, 0
    %p130 = por %p128, %p129
    %s132 = sadd.s32 %s131, 1
    %p135 = scmp.eq.s32.totalorder %s13, 1
    %p136 = scmp.ne.s32.totalorder %s131, %s133
    %p137 = scmp.eq.s32.totalorder %s13, 0
    %p138 = por %p136, %p137
    %p139 = scmp.ne.s32.totalorder %s131, %s133
    %p140 = scmp.eq.s32.totalorder %s18, 1
    %p141 = por %p139, %p140
    %p142 = scmp.ne.s32.totalorder %s133, %s134
    %p143 = scmp.eq.s32.totalorder %s18, 0
    %p144 = por %p142, %p143
    %p145 = scmp.ne.s32.totalorder %s133, %s134
    %p146 = scmp.eq.s32.totalorder %s19, 1
    %p147 = por %p145, %p146
    %p149 = scmp.ne.s32.totalorder %s134, %s148
    %p150 = scmp.eq.s32.totalorder %s19, 0
    %p151 = por %p149, %p150
    %s153 = sadd.s32 %s152, 1
    %p156 = scmp.eq.s32.totalorder %s13, 1
    %p157 = scmp.ne.s32.totalorder %s152, %s154
    %p158 = scmp.eq.s32.totalorder %s13, 0
    %p159 = por %p157, %p158
    %p160 = scmp.ne.s32.totalorder %s152, %s154
    %p161 = scmp.eq.s32.totalorder %s18, 1
    %p162 = por %p160, %p161
    %p163 = scmp.ne.s32.totalorder %s154, %s155
    %p164 = scmp.eq.s32.totalorder %s18, 0
    %p165 = por %p163, %p164
    %p166 = scmp.ne.s32.totalorder %s154, %s155
    %p167 = scmp.eq.s32.totalorder %s19, 1
    %p168 = por %p166, %p167
    %p170 = scmp.ne.s32.totalorder %s155, %s169
    %p171 = scmp.eq.s32.totalorder %s19, 0
    %p172 = por %p170, %p171
    %s173 = ssub.s32 %s13, %s20
    %p174 = scmp.eq.s32.totalorder %s173, 0
    %s176 = sadd.s32 %s175, 1
    %s177 = scalar_select %p174, %s175, %s176
    %p180 = pneg %p174
    %p181 = scmp.eq.s32.totalorder %s13, 1
    %p182 = por %p180, %p181
    %p183 = scmp.ne.s32.totalorder %s175, %s178
    %p184 = scmp.eq.s32.totalorder %s13, 0
    %p185 = por %p183, %p184
    %p186 = scmp.ne.s32.totalorder %s175, %s178
    %p187 = scmp.eq.s32.totalorder %s18, 1
    %p188 = por %p186, %p187
    %p189 = scmp.ne.s32.totalorder %s178, %s179
    %p190 = scmp.eq.s32.totalorder %s18, 0
    %p191 = por %p189, %p190
    %p192 = scmp.ne.s32.totalorder %s178, %s179
    %p193 = scmp.eq.s32.totalorder %s19, 1
    %p194 = por %p192, %p193
    %p196 = scmp.ne.s32.totalorder %s179, %s195
    %p197 = scmp.eq.s32.totalorder %s19, 0
    %p198 = por %p196, %p197
    %p199 = scmp.le.s32.totalorder 1, %s13
    %p200 = scmp.lt.s32.totalorder %s13, 3
    %p201 = pnand %p199, %p200
    %p202 = pneg %p201
    // Predicated region
    $region9: #{tpu_custom_call.1} parent=5 // pred_check
      _
    $region10: #{tpu_custom_call.1} parent=5 // pred_check_branch
      %204 = sbr.rel (%p201) target = $region12
    $region11: #{tpu_custom_call.1} parent=5 // pred_region
      %s205 = ssub.s32 %s13, 1
      // Predicated region
      $region13: #{tpu_custom_call.1} parent=11 // pred_check
        %p206 = pneg %p60
      $region14: #{tpu_custom_call.1} parent=11 // pred_check_branch
        %208 = sbr.rel (%p206) target = $region16
      $region15: #{tpu_custom_call.1} parent=11 // pred_region
        _
      $region16: #{tpu_custom_call.1} parent=11 // pred_fallthru
        _
      // Predicated region
      $region17: #{tpu_custom_call.1} parent=11 // pred_check
        %p209 = pneg %p81
      $region18: #{tpu_custom_call.1} parent=11 // pred_check_branch
        %211 = sbr.rel (%p209) target = $region20
      $region19: #{tpu_custom_call.1} parent=11 // pred_region
        _
      $region20: #{tpu_custom_call.1} parent=11 // pred_fallthru
        _
      // Predicated region
      $region21: #{tpu_custom_call.1} parent=11 // pred_check
        %p212 = pneg %p102
      $region22: #{tpu_custom_call.1} parent=11 // pred_check_branch
        %214 = sbr.rel (%p212) target = $region24
      $region23: #{tpu_custom_call.1} parent=11 // pred_region
        _
      $region24: #{tpu_custom_call.1} parent=11 // pred_fallthru
        _
      // Predicated region
      $region25: #{tpu_custom_call.1} parent=11 // pred_check
        %p215 = pneg %p123
      $region26: #{tpu_custom_call.1} parent=11 // pred_check_branch
        %217 = sbr.rel (%p215) target = $region28
      $region27: #{tpu_custom_call.1} parent=11 // pred_region
        _
      $region28: #{tpu_custom_call.1} parent=11 // pred_fallthru
        _
      // Predicated region
      $region29: #{tpu_custom_call.1} parent=11 // pred_check
        %p218 = pneg %p144
      $region30: #{tpu_custom_call.1} parent=11 // pred_check_branch
        %220 = sbr.rel (%p218) target = $region32
      $region31: #{tpu_custom_call.1} parent=11 // pred_region
        _
      $region32: #{tpu_custom_call.1} parent=11 // pred_fallthru
        _
      // Predicated region
      $region33: #{tpu_custom_call.1} parent=11 // pred_check
        %p221 = pneg %p165
      $region34: #{tpu_custom_call.1} parent=11 // pred_check_branch
        %223 = sbr.rel (%p221) target = $region36
      $region35: #{tpu_custom_call.1} parent=11 // pred_region
        _
      $region36: #{tpu_custom_call.1} parent=11 // pred_fallthru
        _
    $region12: #{tpu_custom_call.1} parent=5 // pred_fallthru
      _
    %p224 = scmp.lt.s32.totalorder %s13, 2
    // Predicated region
    $region37: #{tpu_custom_call.1} parent=5 // pred_check
      %p225 = pneg %p224
    $region38: #{tpu_custom_call.1} parent=5 // pred_check_branch
      %227 = sbr.rel (%p225) target = $region40
    $region39: #{tpu_custom_call.1} parent=5 // pred_region
      // Predicated region
      $region41: #{tpu_custom_call.1} parent=39 // pred_check
        %p228 = pneg %p33
      $region42: #{tpu_custom_call.1} parent=39 // pred_check_branch
        %230 = sbr.rel (%p228) target = $region44
      $region43: #{tpu_custom_call.1} parent=39 // pred_region
        %s231 = smul.u32 2, %s13
        %p232 = scmp.lt.s32.totalorder %s231, 3
        %s233 = scalar_select %p232, %s231, 3
        %s234 = smul.addr %s233, 8
        %s235 = scalar_lea.vmem %s0, %s234
        %s236 = smul.u32 2, %s13
      $region44: #{tpu_custom_call.1} parent=39 // pred_fallthru
        _
    $region40: #{tpu_custom_call.1} parent=5 // pred_fallthru
      _
    %p237 = scmp.le.s32.totalorder 1, %s13
    %p238 = scmp.lt.s32.totalorder %s13, 3
    %p239 = pnand %p237, %p238
    %p240 = pneg %p239
    // Predicated region
    $region45: #{tpu_custom_call.1} parent=5 // pred_check
      _
    $region46: #{tpu_custom_call.1} parent=5 // pred_check_branch
      %242 = sbr.rel (%p239) target = $region48
    $region47: #{tpu_custom_call.1} parent=5 // pred_region
      %s243 = ssub.s32 %s13, 1
      %s244 = smul.u32 2, %s18
      %p245 = scmp.lt.s32.totalorder %s244, 3
      %s246 = scalar_select %p245, %s244, 3
      %s247 = smul.addr %s246, 8
      %s248 = scalar_lea.vmem %s0, %s247
      %p249 = pneg %p39
      %p250 = pneg %p36
      %p251 = pneg %p60
      %p252 = pneg %p57
      %p253 = pneg %p81
      %p254 = pneg %p78
      %p255 = pneg %p102
      %p256 = pneg %p99
      %p257 = pneg %p123
      %p258 = pneg %p120
      %p259 = pneg %p144
      %p260 = pneg %p141
      %p261 = pneg %p165
      %p262 = pneg %p162
      %p263 = pneg %p191
      %p264 = pneg %p188
      %s265 = smul.u32 2, %s18
      %p266 = scmp.lt.s32.totalorder %s265, 3
      %s267 = scalar_select %p266, %s265, 3
      %s268 = smul.addr %s267, 4
      %s269 = scalar_lea.vmem %s7, %s268
      %s270 = smul.u32 2, %s18
      %p271 = scmp.lt.s32.totalorder %s270, 3
      %s272 = scalar_select %p271, %s270, 3
      %s273 = smul.addr %s272, 8
      %s274 = scalar_lea.vmem %s0, %s273
      %s275 = smul.u32 2, %s18
      %s276 = smul.u32 2, %s18
      %p277 = scmp.lt.s32.totalorder %s276, 3
      %s278 = scalar_select %p277, %s276, 3
      %s279 = smul.addr %s278, 4
      %s280 = scalar_lea.vmem %s7, %s279
      %s281 = smul.u32 2, %s18
      %v283 = vld [vmem:[%s6] sm:$0xf]
      %v284 = vld [vmem:[%s274] sm:$0xff]
      %v285 = vld [vmem:[%s274 + $0x8] sm:$0xff]
      %v286 = vpack.c.bf16 %v285, %v284
      %v287 = vld [vmem:[%s2] sm:$0xf]
      %v288 = vlaneseq
      %v289 = vshrl.u32 %v288, 7
      %v290 = vsub.s32 0, %v289
      %v291 = vrot.slane %v283, %v290
      %vm292 = vcmask 64512
      %v294 = vsel %vm292, %v286, 0
      %vm296 = vcmask 1043456
      %v298 = vsel %vm296, %v287, 0
      %300 = vmatprep.subr.bf16.mxu0 0
      %301 = vmatpush1.bf16.msra.mxu0 0
      %302 = vmatprep.subr.bf16.mxu0 0
      %303 = vmatpush1.bf16.msra.mxu0 0
      %304 = vmatprep.subr.bf16.mxu0 0
      %305 = vmatpush1.bf16.msra.mxu0 0
      %306 = vmatprep.subr.bf16.mxu0 0
      %307 = vmatpush1.bf16.msra.mxu0 0
      %308 = vmatprep.subr.bf16.mxu0 0
      %309 = vmatpush1.bf16.msra.mxu0 0
      %310 = vmatprep.subr.bf16.mxu0 0
      %311 = vmatpush1.bf16.msra.mxu0 0
      %312 = vmatprep.subr.bf16.mxu0 0
      %313 = vmatpush1.bf16.msra.mxu0 0
      %314 = vmatprep.subr.bf16.mxu0 0
      %315 = vmatpush1.bf16.msra.mxu0 %v298
      %316 = vmatprep.subr.bf16.mxu0 0
      %317 = vmatpush2.bf16.msra.mxu0 0
      %318 = vmatprep.subr.bf16.mxu0 0
      %319 = vmatpush2.bf16.msra.mxu0 0
      %320 = vmatprep.subr.bf16.mxu0 0
      %321 = vmatpush2.bf16.msra.mxu0 0
      %322 = vmatprep.subr.bf16.mxu0 0
      %323 = vmatpush2.bf16.msra.mxu0 0
      %324 = vmatprep.subr.bf16.mxu0 0
      %325 = vmatpush2.bf16.msra.mxu0 0
      %326 = vmatprep.subr.bf16.mxu0 0
      %327 = vmatpush2.bf16.msra.mxu0 0
      %328 = vmatprep.subr.bf16.mxu0 0
      %329 = vmatpush2.bf16.msra.mxu0 0
      %330 = vmatprep.subr.bf16.mxu0 0
      %331 = vmatpush2.bf16.msra.mxu0 0
      %332 = vmatprep.mubr.bf16.mxu0 0
      %333 = vmatmul.mubr.bf16.gmra.mxu0 %v294
      %v334 = vpop.f32.mrf.mxu0
      %v335 = vadd.f32 %v291, %v334
      %v336 = vpop.f32.mrf.mxu0
      %v337 = vpop.f32.mrf.mxu0
      %v338 = vadd.f32 %v291, %v337
      %v339 = vpop.f32.mrf.mxu0
      %340 = vdwg.mxu0
      %v341 = vmul.f32 %v335, 0.5
      %v342 = vmul.f32 %v338, 0.5
      %v343 = vtanh.pop %v341
      %v344 = vtanh.pop %v342
      %v345 = vmul.f32 %v343, 0.5
      %v346 = vmul.f32 %v344, 0.5
      %v347 = vadd.f32 %v345, 0.5
      %v348 = vadd.f32 %v346, 0.5
      %v349 = vmul.f32 %v335, %v347
      %v350 = vmul.f32 %v338, %v348
      %v351 = vld [vmem:[%s1] sm:$0xff]
      %v352 = vld [vmem:[%s1 + $0x8] sm:$0xff]
      %v353 = vadd.f32 %v349, %v351
      %v354 = vadd.f32 %v350, %v352
      %v355 = vpack.c.bf16 %v354, %v353
      %v356 = vld [vmem:[%s3] sm:$0xf]
      %v357 = vld [vmem:[%s3 + $0x4] sm:$0xf]
      %v358 = vld [vmem:[%s3 + $0x8] sm:$0xf]
      %v359 = vld [vmem:[%s3 + $0xc] sm:$0xf]
      %v360 = vlaneseq
      %v361 = vshrl.u32 %v360, 7
      %v362 = vsub.s32 1, %v361
      %v363 = vrot.slane %v283, %v362
      %v368 = vunpack.c.l.b16 %v356
      %v369 = vunpack.c.l.b16 %v357
      %v370 = vunpack.c.l.b16 %v358
      %v371 = vunpack.c.l.b16 %v359
      %v372 = vpack.c.b16 %v369, %v368
      %v373 = vpack.c.b16 %v371, %v370
      %vm376 = vcmask 261120
      %v378 = vsel %vm376, %v355, 0
      %380 = vmatprep.subr.bf16.mxu0 0
      %381 = vmatpush1.bf16.msra.mxu0 0
      %382 = vmatprep.subr.bf16.mxu0 0
      %383 = vmatpush1.bf16.msra.mxu0 0
      %384 = vmatprep.subr.bf16.mxu0 0
      %385 = vmatpush1.bf16.msra.mxu0 0
      %386 = vmatprep.subr.bf16.mxu0 0
      %387 = vmatpush1.bf16.msra.mxu0 0
      %388 = vmatprep.subr.bf16.mxu0 0
      %389 = vmatpush1.bf16.msra.mxu0 0
      %390 = vmatprep.subr.bf16.mxu0 0
      %391 = vmatpush1.bf16.msra.mxu0 0
      %392 = vmatprep.subr.bf16.mxu0 0
      %393 = vmatpush1.bf16.msra.mxu0 %v373
      %394 = vmatprep.subr.bf16.mxu0 0
      %395 = vmatpush1.bf16.msra.mxu0 %v372
      %396 = vmatprep.subr.bf16.mxu0 0
      %397 = vmatpush2.bf16.msra.mxu0 0
      %398 = vmatprep.subr.bf16.mxu0 0
      %399 = vmatpush2.bf16.msra.mxu0 0
      %400 = vmatprep.subr.bf16.mxu0 0
      %401 = vmatpush2.bf16.msra.mxu0 0
      %402 = vmatprep.subr.bf16.mxu0 0
      %403 = vmatpush2.bf16.msra.mxu0 0
      %404 = vmatprep.subr.bf16.mxu0 0
      %405 = vmatpush2.bf16.msra.mxu0 0
      %406 = vmatprep.subr.bf16.mxu0 0
      %407 = vmatpush2.bf16.msra.mxu0 0
      %408 = vmatprep.subr.bf16.mxu0 0
      %409 = vmatpush2.bf16.msra.mxu0 0
      %410 = vmatprep.subr.bf16.mxu0 0
      %411 = vmatpush2.bf16.msra.mxu0 0
      %412 = vmatprep.mubr.bf16.mxu0 0
      %413 = vmatmul.mubr.bf16.gmra.mxu0 %v378
      %v414 = vpop.f32.mrf.mxu0
      %v415 = vadd.f32 %v363, %v414
      %v416 = vpop.f32.mrf.mxu0
      %v417 = vpop.f32.mrf.mxu0
      %v418 = vadd.f32 %v363, %v417
      %v419 = vpop.f32.mrf.mxu0
      %420 = vdwg.mxu0
      %v421 = vmul.f32 %v415, 0.5
      %v422 = vmul.f32 %v418, 0.5
      %v423 = vtanh.pop %v421
      %v424 = vtanh.pop %v422
      %v425 = vmul.f32 %v423, 0.5
      %v426 = vmul.f32 %v424, 0.5
      %v427 = vadd.f32 %v425, 0.5
      %v428 = vadd.f32 %v426, 0.5
      %v429 = vmul.f32 %v415, %v427
      %v430 = vmul.f32 %v418, %v428
      %v431 = vpack.c.bf16 %v430, %v429
      %v432 = vld [vmem:[%s4] sm:$0xf]
      %v433 = vld [vmem:[%s4 + $0x4] sm:$0xf]
      %v434 = vld [vmem:[%s4 + $0x8] sm:$0xf]
      %v435 = vld [vmem:[%s4 + $0xc] sm:$0xf]
      %v436 = vlaneseq
      %v437 = vshrl.u32 %v436, 7
      %v438 = vsub.s32 2, %v437
      %v439 = vrot.slane %v283, %v438
      %v444 = vunpack.c.l.b16 %v432
      %v445 = vunpack.c.l.b16 %v433
      %v446 = vunpack.c.l.b16 %v434
      %v447 = vunpack.c.l.b16 %v435
      %v448 = vpack.c.b16 %v445, %v444
      %v449 = vpack.c.b16 %v447, %v446
      %v453 = vsel %vm376, %v431, 0
      %455 = vmatprep.subr.bf16.mxu0 0
      %456 = vmatpush1.bf16.msra.mxu0 0
      %457 = vmatprep.subr.bf16.mxu0 0
      %458 = vmatpush1.bf16.msra.mxu0 0
      %459 = vmatprep.subr.bf16.mxu0 0
      %460 = vmatpush1.bf16.msra.mxu0 0
      %461 = vmatprep.subr.bf16.mxu0 0
      %462 = vmatpush1.bf16.msra.mxu0 0
      %463 = vmatprep.subr.bf16.mxu0 0
      %464 = vmatpush1.bf16.msra.mxu0 0
      %465 = vmatprep.subr.bf16.mxu0 0
      %466 = vmatpush1.bf16.msra.mxu0 0
      %467 = vmatprep.subr.bf16.mxu0 0
      %468 = vmatpush1.bf16.msra.mxu0 %v449
      %469 = vmatprep.subr.bf16.mxu0 0
      %470 = vmatpush1.bf16.msra.mxu0 %v448
      %471 = vmatprep.subr.bf16.mxu0 0
      %472 = vmatpush2.bf16.msra.mxu0 0
      %473 = vmatprep.subr.bf16.mxu0 0
      %474 = vmatpush2.bf16.msra.mxu0 0
      %475 = vmatprep.subr.bf16.mxu0 0
      %476 = vmatpush2.bf16.msra.mxu0 0
      %477 = vmatprep.subr.bf16.mxu0 0
      %478 = vmatpush2.bf16.msra.mxu0 0
      %479 = vmatprep.subr.bf16.mxu0 0
      %480 = vmatpush2.bf16.msra.mxu0 0
      %481 = vmatprep.subr.bf16.mxu0 0
      %482 = vmatpush2.bf16.msra.mxu0 0
      %483 = vmatprep.subr.bf16.mxu0 0
      %484 = vmatpush2.bf16.msra.mxu0 0
      %485 = vmatprep.subr.bf16.mxu0 0
      %486 = vmatpush2.bf16.msra.mxu0 0
      %487 = vmatprep.mubr.bf16.mxu0 0
      %488 = vmatmul.mubr.bf16.gmra.mxu0 %v453
      %v489 = vpop.f32.mrf.mxu0
      %v490 = vadd.f32 %v439, %v489
      %v491 = vpop.f32.mrf.mxu0
      %v492 = vpop.f32.mrf.mxu0
      %v493 = vadd.f32 %v439, %v492
      %v494 = vpop.f32.mrf.mxu0
      %495 = vdwg.mxu0
      %v496 = vmul.f32 %v490, 0.5
      %v497 = vmul.f32 %v493, 0.5
      %v498 = vtanh.pop %v496
      %v499 = vtanh.pop %v497
      %v500 = vmul.f32 %v498, 0.5
      %v501 = vmul.f32 %v499, 0.5
      %v502 = vadd.f32 %v500, 0.5
      %v503 = vadd.f32 %v501, 0.5
      %v504 = vmul.f32 %v490, %v502
      %v505 = vmul.f32 %v493, %v503
      %v506 = vpack.c.bf16 %v505, %v504
      %v507 = vld [vmem:[%s5] sm:$0xf]
      %v508 = vld [vmem:[%s5 + $0x4] sm:$0xf]
      %v509 = vld [vmem:[%s5 + $0x8] sm:$0xf]
      %v510 = vld [vmem:[%s5 + $0xc] sm:$0xf]
      %v511 = vlaneseq
      %v512 = vshrl.u32 %v511, 7
      %v513 = vsub.s32 3, %v512
      %v514 = vrot.slane %v283, %v513
      %v519 = vunpack.c.l.b16 %v507
      %v520 = vunpack.c.l.b16 %v508
      %v521 = vunpack.c.l.b16 %v509
      %v522 = vunpack.c.l.b16 %v510
      %v523 = vpack.c.b16 %v520, %v519
      %v524 = vpack.c.b16 %v522, %v521
      %v528 = vsel %vm376, %v506, 0
      %530 = vmatprep.subr.bf16.mxu0 0
      %531 = vmatpush1.bf16.msra.mxu0 0
      %532 = vmatprep.subr.bf16.mxu0 0
      %533 = vmatpush1.bf16.msra.mxu0 0
      %534 = vmatprep.subr.bf16.mxu0 0
      %535 = vmatpush1.bf16.msra.mxu0 0
      %536 = vmatprep.subr.bf16.mxu0 0
      %537 = vmatpush1.bf16.msra.mxu0 0
      %538 = vmatprep.subr.bf16.mxu0 0
      %539 = vmatpush1.bf16.msra.mxu0 0
      %540 = vmatprep.subr.bf16.mxu0 0
      %541 = vmatpush1.bf16.msra.mxu0 0
      %542 = vmatprep.subr.bf16.mxu0 0
      %543 = vmatpush1.bf16.msra.mxu0 %v524
      %544 = vmatprep.subr.bf16.mxu0 0
      %545 = vmatpush1.bf16.msra.mxu0 %v523
      %546 = vmatprep.subr.bf16.mxu0 0
      %547 = vmatpush2.bf16.msra.mxu0 0
      %548 = vmatprep.subr.bf16.mxu0 0
      %549 = vmatpush2.bf16.msra.mxu0 0
      %550 = vmatprep.subr.bf16.mxu0 0
      %551 = vmatpush2.bf16.msra.mxu0 0
      %552 = vmatprep.subr.bf16.mxu0 0
      %553 = vmatpush2.bf16.msra.mxu0 0
      %554 = vmatprep.subr.bf16.mxu0 0
      %555 = vmatpush2.bf16.msra.mxu0 0
      %556 = vmatprep.subr.bf16.mxu0 0
      %557 = vmatpush2.bf16.msra.mxu0 0
      %558 = vmatprep.subr.bf16.mxu0 0
      %559 = vmatpush2.bf16.msra.mxu0 0
      %560 = vmatprep.subr.bf16.mxu0 0
      %561 = vmatpush2.bf16.msra.mxu0 0
      %562 = vmatprep.mubr.bf16.mxu0 0
      %563 = vmatmul.mubr.bf16.gmra.mxu0 %v528
      %v564 = vpop.f32.mrf.mxu0
      %v565 = vadd.f32 %v514, %v564
      %v566 = vpop.f32.mrf.mxu0
      %v567 = vpop.f32.mrf.mxu0
      %v568 = vadd.f32 %v514, %v567
      %v569 = vpop.f32.mrf.mxu0
      %570 = vdwg.mxu0
      %v571 = vpack.c.bf16 %v568, %v565
      %v573 = vunpack.c.l.b16 %v571
      %v574 = vunpack.c.h.b16 %v571
      %v575 = vpack.c.b16 %v573, %v573
      %v576 = vpack.c.b16 %v574, %v574
      %vm579 = vcmask 93184
      %580 = vst.msk [vmem:[%s280] sm:$0xf] %vm579, %v575
      %581 = vst.msk [vmem:[%s280 + $0x4] sm:$0xf] %vm579, %v576
      %s582 = smul.u32 2, %s18
      %p583 = scmp.lt.s32.totalorder %s582, 3
      %s584 = scalar_select %p583, %s582, 3
      %s585 = smul.addr %s584, 4
      %s586 = scalar_lea.vmem %s7, %s585
      // Predicated region
      $region49: #{tpu_custom_call.1} parent=47 // pred_check
        %p587 = pneg %p188
      $region50: #{tpu_custom_call.1} parent=47 // pred_check_branch
        %589 = sbr.rel (%p587) target = $region52
      $region51: #{tpu_custom_call.1} parent=47 // pred_region
        %s590 = smul.u32 2, %s18
      $region52: #{tpu_custom_call.1} parent=47 // pred_fallthru
        _
    $region48: #{tpu_custom_call.1} parent=5 // pred_fallthru
      _
    %p591 = scmp.le.s32.totalorder 2, %s13
    // Predicated region
    $region53: #{tpu_custom_call.1} parent=5 // pred_check
      %p592 = pneg %p591
    $region54: #{tpu_custom_call.1} parent=5 // pred_check_branch
      %594 = sbr.rel (%p592) target = $region56
    $region55: #{tpu_custom_call.1} parent=5 // pred_region
      %s595 = ssub.s32 %s13, 2
      // Predicated region
      $region57: #{tpu_custom_call.1} parent=55 // pred_check
        %p596 = pneg %p194
      $region58: #{tpu_custom_call.1} parent=55 // pred_check_branch
        %598 = sbr.rel (%p596) target = $region60
      $region59: #{tpu_custom_call.1} parent=55 // pred_region
        %s599 = smul.u32 2, %s19
        %p600 = scmp.lt.s32.totalorder %s599, 3
        %s601 = scalar_select %p600, %s599, 3
        %s602 = smul.addr %s601, 4
        %s603 = scalar_lea.vmem %s7, %s602
      $region60: #{tpu_custom_call.1} parent=55 // pred_fallthru
        _
    $region56: #{tpu_custom_call.1} parent=5 // pred_fallthru
      _
  $region6: #{tpu_custom_call.1} parent=0 // loop_footer
    %s17 = sadd.s32 1, %s13
  $region7: #{tpu_custom_call.1} parent=0 // loop_footer_branch
    %12 = sbr.rel target = $region3
  $region8: #{tpu_custom_call.1} parent=0 // loop_exit
    _

</llo_original>
